<compile_context>
chip_gen: v5e
topology: v5e:2x2
jax: 0.10.0
libtpu: 0.0.40
codegen_flags: <defaults>
</compile_context>

<pallas_src>
import functools
import math

import jax
import jax.numpy as jnp
from jax import lax
from jax.experimental import pallas as pl
from jax.experimental.pallas import tpu as pltpu

_THRESHOLD = 0.999999
_EPS = 1e-12              # torch.nn.functional.normalize default eps
_RAD2DEG = 180.0 / math.pi

# Abramowitz & Stegun 4.4.46: acos(x) = sqrt(1 - x) * poly(x) on [0, 1],
# |error| <= 2e-8 rad.  Clamp keeps |x| <= 0.999999 so this is f32-safe.
_ACOS_COEFFS = (
    -0.0012624911, 0.0066700901, -0.0170881256, 0.0308918810,
    -0.0501743046, 0.0889789874, -0.2145988016, 1.5707963050,
)


def _acos_degrees(x):
    """Elementwise arccos(x) in degrees for x in [-1, 1] (VPU/EUP ops only)."""
    ax = jnp.abs(x)
    poly = _ACOS_COEFFS[0]
    for c in _ACOS_COEFFS[1:]:
        poly = poly * ax + c
    acos_pos = jnp.sqrt(jnp.maximum(1.0 - ax, 0.0)) * poly   # acos(|x|)
    acos = jnp.where(x < 0.0, math.pi - acos_pos, acos_pos)
    return acos * _RAD2DEG


def _round_up(x, m):
    return (x + m - 1) // m * m


def _angular_kernel(p_ref, t_ref, o_ref, *, hw, rows_tile, needs_mask):
    """p_ref/t_ref: (1, C, ROWS, 128) blocks; o_ref: (1, 1, 8, 128) partial sums."""
    p = p_ref[0].astype(jnp.float32)                 # (C, ROWS, 128)
    t = t_ref[0].astype(jnp.float32)

    pp = jnp.sum(p * p, axis=0)                      # (ROWS, 128)
    tt = jnp.sum(t * t, axis=0)
    dot = jnp.sum(p * t, axis=0)

    # F.normalize eps path: dot / (max(||p||,eps) * max(||t||,eps))
    inv = lax.rsqrt(jnp.maximum(pp, _EPS * _EPS) * jnp.maximum(tt, _EPS * _EPS))
    cos = jnp.clip(dot * inv, -_THRESHOLD, _THRESHOLD)
    angle = _acos_degrees(cos)                       # (ROWS, 128), degrees

    def _reduce_store(a):
        # Fold ROWS down to 8 sublanes on full vregs -> unmasked (8,128) store.
        o_ref[0, 0] = jnp.sum(a.reshape(rows_tile // 8, 8, 128), axis=0)

    if needs_mask:
        i = pl.program_id(1)
        last = pl.num_programs(1) - 1

        @pl.when(i != last)
        def _():                                      # full tiles: no mask work
            _reduce_store(angle)

        @pl.when(i == last)
        def _():
            # Mask padded / block-padding pixels BEFORE the row reduction.
            row = lax.broadcasted_iota(jnp.int32, (rows_tile, 128), 0)
            lane = lax.broadcasted_iota(jnp.int32, (rows_tile, 128), 1)
            pix = (i * rows_tile + row) * 128 + lane
            _reduce_store(jnp.where(pix < hw, angle, 0.0))
    else:
        _reduce_store(angle)


def angular_loss(pred, target, *, block_bytes=2 * 1024 * 1024):
    """pred, target: NCHW arrays.  Returns scalar mean angular error in degrees."""
    if pred.shape != target.shape:
        raise ValueError("pred/target shape mismatch")
    n, c, h, w = pred.shape
    hw = h * w

    # Dense repack of the pixel axis: (N, C, rows, 128) with rows % 8 == 0.
    hw_pad = _round_up(hw, 8 * 128)
    rows_total = hw_pad // 128

    p = pred.reshape(n, c, hw)
    t = target.reshape(n, c, hw)
    if hw_pad != hw:
        # Tail pad costs one extra copy; common sizes (H, W multiples of 32)
        # hit the free-reshape path.  Padded pixels are masked in-kernel.
        p = jnp.pad(p, ((0, 0), (0, 0), (0, hw_pad - hw)))
        t = jnp.pad(t, ((0, 0), (0, 0), (0, hw_pad - hw)))
    p = p.reshape(n, c, rows_total, 128)
    t = t.reshape(n, c, rows_total, 128)

    # ~2 MiB per input block (2 inputs x 2 buffers ~ 8 MiB) -> amortizes the
    # per-grid-step overhead, fits v5e 16 MiB / v6e-v7x 32 MiB scoped VMEM.
    itemsize = jnp.dtype(pred.dtype).itemsize
    rows_tile = max(16, (block_bytes // (c * 128 * itemsize)) // 16 * 16)
    if rows_tile >= rows_total:
        rows_tile = rows_total                      # full-dim block is always legal
    num_tiles = pl.cdiv(rows_total, rows_tile)
    # v7x: keep >= 2 grid steps when N == 1 so both TensorCores get work.
    if n == 1 and num_tiles == 1 and rows_total >= 32:
        rows_tile = _round_up(pl.cdiv(rows_total, 2), 16)
        num_tiles = pl.cdiv(rows_total, rows_tile)

    needs_mask = (num_tiles * rows_tile * 128) != hw

    partials = pl.pallas_call(
        functools.partial(_angular_kernel, hw=hw, rows_tile=rows_tile,
                          needs_mask=needs_mask),
        out_shape=jax.ShapeDtypeStruct((n, num_tiles, 8, 128), jnp.float32),
        grid_spec=pltpu.PrefetchScalarGridSpec(
            num_scalar_prefetch=0,
            grid=(n, num_tiles),
            in_specs=[
                pl.BlockSpec((1, c, rows_tile, 128), lambda b, i: (b, 0, i, 0)),
                pl.BlockSpec((1, c, rows_tile, 128), lambda b, i: (b, 0, i, 0)),
            ],
            out_specs=pl.BlockSpec((1, 1, 8, 128), lambda b, i: (b, i, 0, 0)),
        ),
        compiler_params=pltpu.CompilerParams(
            dimension_semantics=("parallel", "parallel")),
    )(p, t)

    return jnp.sum(partials) / (n * hw)


def _reference(pred, target):
    p = pred / jnp.maximum(jnp.linalg.norm(pred, axis=1, keepdims=True), _EPS)
    t = target / jnp.maximum(jnp.linalg.norm(target, axis=1, keepdims=True), _EPS)
    cos = jnp.clip(jnp.sum(p * t, axis=1), -_THRESHOLD, _THRESHOLD)
    return jnp.mean(jnp.arccos(cos) * _RAD2DEG)


if __name__ == "__main__":
    key = jax.random.PRNGKey(0)
    k1, k2, k3, k4, k5, k6 = jax.random.split(key, 6)

    # Case 1: N=2, C=3, H=W=16 -> 256 pixels (single tile, masked tail rows).
    pred1 = jax.random.normal(k1, (2, 3, 16, 16), dtype=jnp.float32)
    targ1 = jax.random.normal(k2, (2, 3, 16, 16), dtype=jnp.float32)
    loss1 = jax.block_until_ready(angular_loss(pred1, targ1))
    ref1 = _reference(pred1, targ1)
    assert jnp.allclose(loss1, ref1, rtol=1e-3, atol=1e-3), (loss1, ref1)

    # Case 2: N=2, C=3, H=W=50 -> 2500 pixels (ragged pixel count, masked tail).
    pred2 = jax.random.normal(k3, (2, 3, 50, 50), dtype=jnp.float32)
    targ2 = jax.random.normal(k4, (2, 3, 50, 50), dtype=jnp.float32)
    loss2 = jax.block_until_ready(angular_loss(pred2, targ2))
    ref2 = _reference(pred2, targ2)
    assert jnp.allclose(loss2, ref2, rtol=1e-3, atol=1e-3), (loss2, ref2)

    # Case 3: N=1, C=3, H=W=64 -> 4096 pixels (free reshape, 2 tiles, no mask).
    pred3 = jax.random.normal(k5, (1, 3, 64, 64), dtype=jnp.float32)
    targ3 = jax.random.normal(k6, (1, 3, 64, 64), dtype=jnp.float32)
    loss3 = jax.block_until_ready(angular_loss(pred3, targ3))
    ref3 = _reference(pred3, targ3)
    assert jnp.allclose(loss3, ref3, rtol=1e-3, atol=1e-3), (loss3, ref3)

    print("KERNEL_OK")
</pallas_src>

<mosaic_0001>
module attributes {stable_mosaic.version = 11 : i64} {
  func.func @_angular_kernel(%arg0: i32, %arg1: i32, %arg2: memref<1x3x8x128xf32, #tpu.memory_space<vmem>>, %arg3: memref<1x3x8x128xf32, #tpu.memory_space<vmem>>, %arg4: memref<1x1x8x128xf32, #tpu.memory_space<vmem>>) attributes {dimension_semantics = [#tpu.dimension_semantics<parallel>, #tpu.dimension_semantics<parallel>], iteration_bounds = array<i64: 2, 1>, scalar_prefetch = 0 : i64, scratch_operands = 0 : i64, tpu.core_type = #tpu.core_type<tc>, window_params = [{transform_indices = @transform_0, window_bounds = array<i64: 1, 3, 8, 128>}, {transform_indices = @transform_1, window_bounds = array<i64: 1, 3, 8, 128>}, {transform_indices = @transform_2, window_bounds = array<i64: 1, 1, 8, 128>}]} {
    %c0 = arith.constant 0 : index
    %c0_0 = arith.constant 0 : index
    %c0_1 = arith.constant 0 : index
    %c0_2 = arith.constant 0 : index
    %0 = vector.load %arg2[%c0, %c0_0, %c0_1, %c0_2] : memref<1x3x8x128xf32, #tpu.memory_space<vmem>>, vector<1x3x8x128xf32>
    %1 = vector.shape_cast %0 : vector<1x3x8x128xf32> to vector<3x8x128xf32>
    %c0_3 = arith.constant 0 : index
    %c0_4 = arith.constant 0 : index
    %c0_5 = arith.constant 0 : index
    %c0_6 = arith.constant 0 : index
    %2 = vector.load %arg3[%c0_3, %c0_4, %c0_5, %c0_6] : memref<1x3x8x128xf32, #tpu.memory_space<vmem>>, vector<1x3x8x128xf32>
    %3 = vector.shape_cast %2 : vector<1x3x8x128xf32> to vector<3x8x128xf32>
    %4 = arith.mulf %1, %1 : vector<3x8x128xf32>
    %cst = arith.constant dense<0.000000e+00> : vector<8x128xf32>
    %5 = vector.multi_reduction <add>, %4, %cst [0] : vector<3x8x128xf32> to vector<8x128xf32>
    %6 = arith.mulf %3, %3 : vector<3x8x128xf32>
    %cst_7 = arith.constant dense<0.000000e+00> : vector<8x128xf32>
    %7 = vector.multi_reduction <add>, %6, %cst_7 [0] : vector<3x8x128xf32> to vector<8x128xf32>
    %8 = arith.mulf %1, %3 : vector<3x8x128xf32>
    %cst_8 = arith.constant dense<0.000000e+00> : vector<8x128xf32>
    %9 = vector.multi_reduction <add>, %8, %cst_8 [0] : vector<3x8x128xf32> to vector<8x128xf32>
    %cst_9 = arith.constant 1.000000e-24 : f32
    %10 = vector.broadcast %cst_9 : f32 to vector<8x128xf32>
    %11 = arith.maximumf %5, %10 : vector<8x128xf32>
    %cst_10 = arith.constant 1.000000e-24 : f32
    %12 = vector.broadcast %cst_10 : f32 to vector<8x128xf32>
    %13 = arith.maximumf %7, %12 : vector<8x128xf32>
    %14 = arith.mulf %11, %13 : vector<8x128xf32>
    %15 = math.rsqrt %14 : vector<8x128xf32>
    %16 = arith.mulf %9, %15 : vector<8x128xf32>
    %cst_11 = arith.constant -0.999998986 : f32
    %cst_12 = arith.constant 0.999998986 : f32
    %17 = vector.broadcast %cst_11 : f32 to vector<8x128xf32>
    %18 = arith.maximumf %17, %16 : vector<8x128xf32>
    %19 = vector.broadcast %cst_12 : f32 to vector<8x128xf32>
    %20 = arith.minimumf %19, %18 : vector<8x128xf32>
    %21 = math.absf %20 : vector<8x128xf32>
    %cst_13 = arith.constant -0.0012624911 : f32
    %22 = vector.broadcast %cst_13 : f32 to vector<8x128xf32>
    %23 = arith.mulf %22, %21 : vector<8x128xf32>
    %cst_14 = arith.constant 6.670090e-03 : f32
    %24 = vector.broadcast %cst_14 : f32 to vector<8x128xf32>
    %25 = arith.addf %23, %24 : vector<8x128xf32>
    %26 = arith.mulf %25, %21 : vector<8x128xf32>
    %cst_15 = arith.constant -0.0170881264 : f32
    %27 = vector.broadcast %cst_15 : f32 to vector<8x128xf32>
    %28 = arith.addf %26, %27 : vector<8x128xf32>
    %29 = arith.mulf %28, %21 : vector<8x128xf32>
    %cst_16 = arith.constant 0.0308918804 : f32
    %30 = vector.broadcast %cst_16 : f32 to vector<8x128xf32>
    %31 = arith.addf %29, %30 : vector<8x128xf32>
    %32 = arith.mulf %31, %21 : vector<8x128xf32>
    %cst_17 = arith.constant -0.0501743034 : f32
    %33 = vector.broadcast %cst_17 : f32 to vector<8x128xf32>
    %34 = arith.addf %32, %33 : vector<8x128xf32>
    %35 = arith.mulf %34, %21 : vector<8x128xf32>
    %cst_18 = arith.constant 0.0889789909 : f32
    %36 = vector.broadcast %cst_18 : f32 to vector<8x128xf32>
    %37 = arith.addf %35, %36 : vector<8x128xf32>
    %38 = arith.mulf %37, %21 : vector<8x128xf32>
    %cst_19 = arith.constant -0.214598805 : f32
    %39 = vector.broadcast %cst_19 : f32 to vector<8x128xf32>
    %40 = arith.addf %38, %39 : vector<8x128xf32>
    %41 = arith.mulf %40, %21 : vector<8x128xf32>
    %cst_20 = arith.constant 1.57079625 : f32
    %42 = vector.broadcast %cst_20 : f32 to vector<8x128xf32>
    %43 = arith.addf %41, %42 : vector<8x128xf32>
    %cst_21 = arith.constant 1.000000e+00 : f32
    %44 = vector.broadcast %cst_21 : f32 to vector<8x128xf32>
    %45 = arith.subf %44, %21 : vector<8x128xf32>
    %cst_22 = arith.constant 0.000000e+00 : f32
    %46 = vector.broadcast %cst_22 : f32 to vector<8x128xf32>
    %47 = arith.maximumf %45, %46 : vector<8x128xf32>
    %48 = math.sqrt %47 : vector<8x128xf32>
    %49 = arith.mulf %48, %43 : vector<8x128xf32>
    %cst_23 = arith.constant 0.000000e+00 : f32
    %50 = vector.broadcast %cst_23 : f32 to vector<8x128xf32>
    %51 = arith.cmpf olt, %20, %50 : vector<8x128xf32>
    %cst_24 = arith.constant 3.14159274 : f32
    %52 = vector.broadcast %cst_24 : f32 to vector<8x128xf32>
    %53 = arith.subf %52, %49 : vector<8x128xf32>
    %54 = arith.select %51, %53, %49 : vector<8x128xi1>, vector<8x128xf32>
    %cst_25 = arith.constant 57.2957802 : f32
    %55 = vector.broadcast %cst_25 : f32 to vector<8x128xf32>
    %56 = arith.mulf %54, %55 : vector<8x128xf32>
    %c0_i32 = arith.constant 0 : i32
    %57 = arith.cmpi ne, %arg1, %c0_i32 : i32
    %58 = arith.extui %57 : i1 to i32
    %c0_i32_26 = arith.constant 0 : i32
    %59 = arith.cmpi ne, %58, %c0_i32_26 : i32
    scf.if %59 {
      %63 = vector.shape_cast %56 : vector<8x128xf32> to vector<1x8x128xf32>
      %cst_29 = arith.constant dense<0.000000e+00> : vector<8x128xf32>
      %64 = vector.multi_reduction <add>, %63, %cst_29 [0] : vector<1x8x128xf32> to vector<8x128xf32>
      %c0_30 = arith.constant 0 : index
      %c0_31 = arith.constant 0 : index
      %c0_32 = arith.constant 0 : index
      %c0_33 = arith.constant 0 : index
      %65 = vector.load %arg4[%c0_30, %c0_31, %c0_32, %c0_33] : memref<1x1x8x128xf32, #tpu.memory_space<vmem>>, vector<1x1x8x128xf32>
      %66 = vector.shape_cast %65 : vector<1x1x8x128xf32> to vector<8x128xf32>
      %67 = vector.shape_cast %64 : vector<8x128xf32> to vector<1x1x8x128xf32>
      tpu.vector_store %arg4[%c0_30, %c0_31, %c0_32, %c0_33], %67 {strides = array<i32>} : memref<1x1x8x128xf32, #tpu.memory_space<vmem>>, vector<1x1x8x128xf32>,
    } else {
    }
    %c0_i32_27 = arith.constant 0 : i32
    %60 = arith.cmpi eq, %arg1, %c0_i32_27 : i32
    %61 = arith.extui %60 : i1 to i32
    %c0_i32_28 = arith.constant 0 : i32
    %62 = arith.cmpi ne, %61, %c0_i32_28 : i32
    scf.if %62 {
      %63 = tpu.iota {dimensions = array<i32: 0>} : vector<8x128xi32>
      %64 = tpu.iota {dimensions = array<i32: 1>} : vector<8x128xi32>
      %c8_i32 = arith.constant 8 : i32
      %65 = arith.muli %arg1, %c8_i32 : i32
      %66 = vector.broadcast %65 : i32 to vector<8x128xi32>
      %67 = arith.addi %66, %63 : vector<8x128xi32>
      %c128_i32 = arith.constant 128 : i32
      %68 = vector.broadcast %c128_i32 : i32 to vector<8x128xi32>
      %69 = arith.muli %67, %68 : vector<8x128xi32>
      %70 = arith.addi %69, %64 : vector<8x128xi32>
      %c256_i32 = arith.constant 256 : i32
      %71 = vector.broadcast %c256_i32 : i32 to vector<8x128xi32>
      %72 = arith.cmpi slt, %70, %71 : vector<8x128xi32>
      %cst_29 = arith.constant 0.000000e+00 : f32
      %73 = vector.broadcast %cst_29 : f32 to vector<8x128xf32>
      %74 = arith.select %72, %56, %73 : vector<8x128xi1>, vector<8x128xf32>
      %75 = vector.shape_cast %74 : vector<8x128xf32> to vector<1x8x128xf32>
      %cst_30 = arith.constant dense<0.000000e+00> : vector<8x128xf32>
      %76 = vector.multi_reduction <add>, %75, %cst_30 [0] : vector<1x8x128xf32> to vector<8x128xf32>
      %c0_31 = arith.constant 0 : index
      %c0_32 = arith.constant 0 : index
      %c0_33 = arith.constant 0 : index
      %c0_34 = arith.constant 0 : index
      %77 = vector.load %arg4[%c0_31, %c0_32, %c0_33, %c0_34] : memref<1x1x8x128xf32, #tpu.memory_space<vmem>>, vector<1x1x8x128xf32>
      %78 = vector.shape_cast %77 : vector<1x1x8x128xf32> to vector<8x128xf32>
      %79 = vector.shape_cast %76 : vector<8x128xf32> to vector<1x1x8x128xf32>
      tpu.vector_store %arg4[%c0_31, %c0_32, %c0_33, %c0_34], %79 {strides = array<i32>} : memref<1x1x8x128xf32, #tpu.memory_space<vmem>>, vector<1x1x8x128xf32>,
    } else {
    }
    return
  }
  func.func @transform_0(%arg0: i32, %arg1: i32) -> (i32, i32, i32, i32) {
    %c0_i32 = arith.constant 0 : i32
    %c0_i32_0 = arith.constant 0 : i32
    %c0_i32_1 = arith.constant 0 : i32
    return %arg0, %c0_i32, %arg1, %c0_i32_0 : i32, i32, i32, i32
  }
  func.func @transform_1(%arg0: i32, %arg1: i32) -> (i32, i32, i32, i32) {
    %c0_i32 = arith.constant 0 : i32
    %c0_i32_0 = arith.constant 0 : i32
    %c0_i32_1 = arith.constant 0 : i32
    return %arg0, %c0_i32, %arg1, %c0_i32_0 : i32, i32, i32, i32
  }
  func.func @transform_2(%arg0: i32, %arg1: i32) -> (i32, i32, i32, i32) {
    %c0_i32 = arith.constant 0 : i32
    %c0_i32_0 = arith.constant 0 : i32
    %c0_i32_1 = arith.constant 0 : i32
    return %arg0, %arg1, %c0_i32, %c0_i32_0 : i32, i32, i32, i32
  }
}

</mosaic_0001>

<llo_original>
// kernel: tpu_custom_call.1
$region0: #{tpu_custom_call.1}
  #allocation0 [shape = 'u32[]', space=smem, size = 0x4, offset = 0x4, fixed_abs, tag = 'smem constant byte address 0x4 - core index']
  #allocation1 [shape = 'u32[72,128]{1,0:T(1,128)}', space=vmem, size = 0x9000, scoped, tag = 'internal scratch']
  %s0 = inlined_call_operand.hbm [shape: f32[2,3,8,128], index: 0, kind: input, shape index: {}]
  %s1 = inlined_call_operand.hbm [shape: f32[2,3,8,128], index: 1, kind: input, shape index: {}]
  %s2 = inlined_call_operand.hbm [shape: f32[2,1,8,128], index: 2, kind: output, shape index: {}]
  %s3 = sld [smem:[#allocation0]]
  $region57: #{tpu_custom_call.1} parent=0
    _
  %s5 = ssub.s32 1, %s3
  %s6 = scalar_select 0, %s5, %s3
  $region1: #{tpu_custom_call.1} parent=0
    #allocation2 [shape = 'u8[24576]{0}', space=vmem, size = 0x6000, scoped, tag = 'input window, operand 0']
    #allocation3 [shape = 's32[2]{0}', space=sflag, size = 0x8, scoped, tag = 'scoped memory for tpu_custom_call.1']
    #allocation4 [shape = 's32[2]{0}', space=sflag, size = 0x8, scoped, tag = 'scoped memory for tpu_custom_call.1']
    #allocation5 [shape = 'u8[24576]{0}', space=vmem, size = 0x6000, scoped, tag = 'input window, operand 1']
    #allocation6 [shape = 's32[2]{0}', space=sflag, size = 0x8, scoped, tag = 'scoped memory for tpu_custom_call.1']
    #allocation7 [shape = 'u8[8192]{0}', space=vmem, size = 0x2000, scoped, tag = 'output window, operand 0']
    %7 = vsyncpa [#allocation3], 0
    %s8 = scalar_lea.sflag [#allocation3], 1
    %9 = vsyncpa %s8, 0
    %10 = vsyncpa [#allocation6], 0
    %s11 = scalar_lea.sflag [#allocation6], 1
    %12 = vsyncpa %s11, 0
    %13 = vsyncpa [#allocation4], 0
    %s14 = scalar_lea.sflag [#allocation4], 1
    %15 = vsyncpa %s14, 0
    loop: start=0, step=1, limit=4
    $region2: #{tpu_custom_call.1} parent=1 // loop_pre_header
      _
    $region3: #{tpu_custom_call.1} parent=1 // loop_header
      %s17 = sphi 0, %s21
      %p18 = scmp.ge.s32.totalorder %s17, 4
      %s24 = sphi 0, %s36
      %s25 = sphi 0, %s32
      %s26 = sphi 0, %s24
      %s27 = sphi 0, %s25
      %s28 = sphi 0, %s26
      %s29 = sphi 0, %s27
      %s41 = sphi 0, %s43
      %s44 = sphi 0, %s41
      %s45 = sphi 0, %s44
      %s61 = sphi 0, %s45
      %s69 = sphi 0, %s71
      %s72 = sphi 0, %s69
      %s73 = sphi 0, %s72
      %s89 = sphi 0, %s73
      %s97 = sphi 0, %s99
      %s100 = sphi 0, %s97
      %s101 = sphi 0, %s100
      %s117 = sphi 0, %s101
    $region4: #{tpu_custom_call.1} parent=1 // loop_header_branch
      %20 = sbr.rel (%p18) target = $region8
    $region5: #{tpu_custom_call.1} parent=1 // loop_body
      %s22 = ssub.s32 %s17, 1
      %s23 = ssub.s32 %s17, 2
      %s30 = sadd.s32 1, %s25
      %p31 = scmp.ge.s32.totalorder %s30, 1
      %s32 = scalar_select %p31, 0, %s30
      %s33 = sadd.s32 1, %s24
      %s34 = scalar_select %p31, %s33, %s24
      %p35 = scmp.ge.s32.totalorder %s34, 2
      %s36 = scalar_select %p35, 0, %s34
      %s37 = ssub.s32 %s24, %s36
      %s38 = ssub.s32 %s25, %s32
      %s39 = sor.u32 %s37, %s38
      %p40 = scmp.eq.s32.totalorder %s39, 0
      %s42 = sadd.s32 %s41, 1
      %s43 = scalar_select %p40, %s41, %s42
      %p46 = pneg %p40
      %p47 = scmp.eq.s32.totalorder %s17, 1
      %p48 = por %p46, %p47
      %p49 = scmp.ne.s32.totalorder %s41, %s44
      %p50 = scmp.eq.s32.totalorder %s17, 0
      %p51 = por %p49, %p50
      %p52 = scmp.ne.s32.totalorder %s41, %s44
      %p53 = scmp.eq.s32.totalorder %s22, 1
      %p54 = por %p52, %p53
      %p55 = scmp.ne.s32.totalorder %s44, %s45
      %p56 = scmp.eq.s32.totalorder %s22, 0
      %p57 = por %p55, %p56
      %p58 = scmp.ne.s32.totalorder %s44, %s45
      %p59 = scmp.eq.s32.totalorder %s23, 1
      %p60 = por %p58, %p59
      %p62 = scmp.ne.s32.totalorder %s45, %s61
      %p63 = scmp.eq.s32.totalorder %s23, 0
      %p64 = por %p62, %p63
      %s65 = ssub.s32 %s24, %s36
      %s66 = ssub.s32 %s25, %s32
      %s67 = sor.u32 %s65, %s66
      %p68 = scmp.eq.s32.totalorder %s67, 0
      %s70 = sadd.s32 %s69, 1
      %s71 = scalar_select %p68, %s69, %s70
      %p74 = pneg %p68
      %p75 = scmp.eq.s32.totalorder %s17, 1
      %p76 = por %p74, %p75
      %p77 = scmp.ne.s32.totalorder %s69, %s72
      %p78 = scmp.eq.s32.totalorder %s17, 0
      %p79 = por %p77, %p78
      %p80 = scmp.ne.s32.totalorder %s69, %s72
      %p81 = scmp.eq.s32.totalorder %s22, 1
      %p82 = por %p80, %p81
      %p83 = scmp.ne.s32.totalorder %s72, %s73
      %p84 = scmp.eq.s32.totalorder %s22, 0
      %p85 = por %p83, %p84
      %p86 = scmp.ne.s32.totalorder %s72, %s73
      %p87 = scmp.eq.s32.totalorder %s23, 1
      %p88 = por %p86, %p87
      %p90 = scmp.ne.s32.totalorder %s73, %s89
      %p91 = scmp.eq.s32.totalorder %s23, 0
      %p92 = por %p90, %p91
      %s93 = ssub.s32 %s24, %s36
      %s94 = ssub.s32 %s25, %s32
      %s95 = sor.u32 %s93, %s94
      %p96 = scmp.eq.s32.totalorder %s95, 0
      %s98 = sadd.s32 %s97, 1
      %s99 = scalar_select %p96, %s97, %s98
      %p102 = pneg %p96
      %p103 = scmp.eq.s32.totalorder %s17, 1
      %p104 = por %p102, %p103
      %p105 = scmp.ne.s32.totalorder %s97, %s100
      %p106 = scmp.eq.s32.totalorder %s17, 0
      %p107 = por %p105, %p106
      %p108 = scmp.ne.s32.totalorder %s97, %s100
      %p109 = scmp.eq.s32.totalorder %s22, 1
      %p110 = por %p108, %p109
      %p111 = scmp.ne.s32.totalorder %s100, %s101
      %p112 = scmp.eq.s32.totalorder %s22, 0
      %p113 = por %p111, %p112
      %p114 = scmp.ne.s32.totalorder %s100, %s101
      %p115 = scmp.eq.s32.totalorder %s23, 1
      %p116 = por %p114, %p115
      %p118 = scmp.ne.s32.totalorder %s101, %s117
      %p119 = scmp.eq.s32.totalorder %s23, 0
      %p120 = por %p118, %p119
      %p121 = scmp.le.s32.totalorder 1, %s17
      %p122 = scmp.lt.s32.totalorder %s17, 3
      %p123 = pnand %p121, %p122
      %p124 = pneg %p123
      // Predicated region
      $region9: #{tpu_custom_call.1} parent=5 // pred_check
        _
      $region10: #{tpu_custom_call.1} parent=5 // pred_check_branch
        %126 = sbr.rel (%p123) target = $region12
      $region11: #{tpu_custom_call.1} parent=5 // pred_region
        %s127 = ssub.s32 %s17, 1
      $region12: #{tpu_custom_call.1} parent=5 // pred_fallthru
        _
      %p128 = scmp.lt.s32.totalorder %s17, 2
      // Predicated region
      $region13: #{tpu_custom_call.1} parent=5 // pred_check
        %p129 = pneg %p128
      $region14: #{tpu_custom_call.1} parent=5 // pred_check_branch
        %131 = sbr.rel (%p129) target = $region16
      $region15: #{tpu_custom_call.1} parent=5 // pred_region
        // Predicated region
        $region17: #{tpu_custom_call.1} parent=15 // pred_check
          %p132 = pneg %p51
        $region18: #{tpu_custom_call.1} parent=15 // pred_check_branch
          %134 = sbr.rel (%p132) target = $region20
        $region19: #{tpu_custom_call.1} parent=15 // pred_region
          %s135 = sand.u32 %s41, 1
          %s136 = scalar_lea.sflag [#allocation3], %s135
          %s137 = sand.u32 %s41, 1
          %s138 = smul.addr %s137, 24
          %s139 = scalar_lea.vmem [#allocation2], %s138
          %141 = vsyncadd %s136, 0
          %s142 = smul.addr %s24, 3
          %s143 = sadd.s32 %s25, %s142
          %s144 = smul.addr %s143, 8
          %s145 = scalar_lea.hbm %s0, %s144
          %s146 = sshll.u32 %s145, 4
          %s147 = int_to_ptr.hbm [resolvable:$true] %s146
          %s148 = sshll.u32 %s139, 4
          %s149 = int_to_ptr.vmem [resolvable:$true] %s148
          %154 = dma.hbm_to_vmem [thread:$0]  %s147, 384, %s149, %s136, 128, 128, 8
        $region20: #{tpu_custom_call.1} parent=15 // pred_fallthru
          _
        // Predicated region
        $region21: #{tpu_custom_call.1} parent=15 // pred_check
          %p155 = pneg %p79
        $region22: #{tpu_custom_call.1} parent=15 // pred_check_branch
          %157 = sbr.rel (%p155) target = $region24
        $region23: #{tpu_custom_call.1} parent=15 // pred_region
          %s158 = sand.u32 %s69, 1
          %s159 = scalar_lea.sflag [#allocation6], %s158
          %s160 = sand.u32 %s69, 1
          %s161 = smul.addr %s160, 24
          %s162 = scalar_lea.vmem [#allocation5], %s161
          %164 = vsyncadd %s159, 0
          %s165 = smul.addr %s24, 3
          %s166 = sadd.s32 %s25, %s165
          %s167 = smul.addr %s166, 8
          %s168 = scalar_lea.hbm %s1, %s167
          %s169 = sshll.u32 %s168, 4
          %s170 = int_to_ptr.hbm [resolvable:$true] %s169
          %s171 = sshll.u32 %s162, 4
          %s172 = int_to_ptr.vmem [resolvable:$true] %s171
          %177 = dma.hbm_to_vmem [thread:$0]  %s170, 384, %s172, %s159, 128, 128, 8
        $region24: #{tpu_custom_call.1} parent=15 // pred_fallthru
          _
      $region16: #{tpu_custom_call.1} parent=5 // pred_fallthru
        _
      %p178 = scmp.le.s32.totalorder 1, %s17
      %p179 = scmp.lt.s32.totalorder %s17, 3
      %p180 = pnand %p178, %p179
      %p181 = pneg %p180
      // Predicated region
      $region25: #{tpu_custom_call.1} parent=5 // pred_check
        _
      $region26: #{tpu_custom_call.1} parent=5 // pred_check_branch
        %183 = sbr.rel (%p180) target = $region28
      $region27: #{tpu_custom_call.1} parent=5 // pred_region
        %s184 = ssub.s32 %s17, 1
        %s185 = sand.u32 %s44, 1
        %s186 = scalar_lea.sflag [#allocation3], %s185
        %s187 = sand.u32 %s44, 1
        %s188 = smul.addr %s187, 24
        %s189 = scalar_lea.vmem [#allocation2], %s188
        // Predicated region
        $region29: #{tpu_custom_call.1} parent=27 // pred_check
          %p190 = pneg %p57
        $region30: #{tpu_custom_call.1} parent=27 // pred_check_branch
          %192 = sbr.rel (%p190) target = $region32
        $region31: #{tpu_custom_call.1} parent=27 // pred_region
          %194 = dma.done %s186, 384
        $region32: #{tpu_custom_call.1} parent=27 // pred_fallthru
          _
        %s195 = sand.u32 %s72, 1
        %s196 = scalar_lea.sflag [#allocation6], %s195
        %s197 = sand.u32 %s72, 1
        %s198 = smul.addr %s197, 24
        %s199 = scalar_lea.vmem [#allocation5], %s198
        // Predicated region
        $region33: #{tpu_custom_call.1} parent=27 // pred_check
          %p200 = pneg %p85
        $region34: #{tpu_custom_call.1} parent=27 // pred_check_branch
          %202 = sbr.rel (%p200) target = $region36
        $region35: #{tpu_custom_call.1} parent=27 // pred_region
          %204 = dma.done %s196, 384
        $region36: #{tpu_custom_call.1} parent=27 // pred_fallthru
          _
        %s205 = sand.u32 %s44, 1
        %s206 = scalar_lea.sflag [#allocation3], %s205
        %s207 = sand.u32 %s44, 1
        %s208 = smul.addr %s207, 24
        %s209 = scalar_lea.vmem [#allocation2], %s208
        %p210 = pneg %p57
        %p211 = pneg %p54
        %s212 = sand.u32 %s72, 1
        %s213 = scalar_lea.sflag [#allocation6], %s212
        %s214 = sand.u32 %s72, 1
        %s215 = smul.addr %s214, 24
        %s216 = scalar_lea.vmem [#allocation5], %s215
        %p217 = pneg %p85
        %p218 = pneg %p82
        %p219 = pneg %p113
        %p220 = pneg %p110
        %s221 = sand.u32 %s100, 1
        %s222 = scalar_lea.sflag [#allocation4], %s221
        %s223 = sand.u32 %s100, 1
        %s224 = smul.addr %s223, 8
        %s225 = scalar_lea.vmem [#allocation7], %s224
        %v226 = vld [vmem:[%s189] sm:$0xff]
        %v227 = vld [vmem:[%s189 + $0x8] sm:$0xff]
        %v228 = vld [vmem:[%s189 + $0x10] sm:$0xff]
        %v229 = vld [vmem:[%s199] sm:$0xff]
        %v230 = vld [vmem:[%s199 + $0x8] sm:$0xff]
        %v231 = vld [vmem:[%s199 + $0x10] sm:$0xff]
        %v232 = vmul.f32 %v226, %v226
        %v233 = vmul.f32 %v227, %v227
        %v234 = vmul.f32 %v228, %v228
        %v235 = vadd.f32 %v232, %v233
        %v236 = vadd.f32 %v235, %v234
        %v237 = vmul.f32 %v229, %v229
        %v238 = vmul.f32 %v230, %v230
        %v239 = vmul.f32 %v231, %v231
        %v240 = vadd.f32 %v237, %v238
        %v241 = vadd.f32 %v240, %v239
        %v242 = vmul.f32 %v226, %v229
        %v243 = vmul.f32 %v227, %v230
        %v244 = vmul.f32 %v228, %v231
        %v245 = vadd.f32 %v242, %v243
        %v246 = vadd.f32 %v245, %v244
        %v247 = vmax.f32 %v236, 1e-24
        %v248 = vmax.f32 %v241, 1e-24
        %v249 = vmul.f32 %v247, %v248
        %v250 = vrsqrt.pop %v249
        %v251 = vmul.f32 %v250, %v249
        %v252 = vmul.f32 %v251, %v250
        %v253 = vmul.f32 0.5, %v252
        %v254 = vsub.f32 1.5, %v253
        %v255 = vmul.f32 %v250, %v254
        %vm256 = vweird.f32 %v249
        %vm257 = vweird.f32 %v250
        %vm258 = vmor %vm256, %vm257
        %v259 = vsel %vm258, %v250, %v255
        %v260 = vmul.f32 %v246, %v259
        %v261 = vmax.f32 %v260, -0.999999
        %v262 = vmin.f32 %v261, 0.999999
        %v263 = vand.u32 2147483647, %v262
        %v264 = vmul.f32 %v263, -0.0012624911
        %v265 = vadd.f32 %v264, 0.00667009
        %v266 = vmul.f32 %v265, %v263
        %v267 = vadd.f32 %v266, -0.017088126
        %v268 = vmul.f32 %v267, %v263
        %v269 = vadd.f32 %v268, 0.03089188
        %v270 = vmul.f32 %v269, %v263
        %v271 = vadd.f32 %v270, -0.050174303
        %v272 = vmul.f32 %v271, %v263
        %v273 = vadd.f32 %v272, 0.08897899
        %v274 = vmul.f32 %v273, %v263
        %v275 = vadd.f32 %v274, -0.2145988
        %v276 = vmul.f32 %v275, %v263
        %v277 = vadd.f32 %v276, 1.5707963
        %v278 = vsub.f32 1.0, %v263
        %v279 = vmax.f32 %v278, 0.0
        %v280 = vrsqrt.pop %v279
        %v281 = vmul.f32 %v280, %v279
        %v282 = vmul.f32 %v281, %v280
        %v283 = vmul.f32 0.5, %v282
        %v284 = vsub.f32 1.5, %v283
        %v285 = vmul.f32 %v280, %v284
        %v286 = vmul.f32 %v279, %v285
        %vm287 = vcmp.eq.f32.partialorder %v279, inf
        %v288 = vsel %vm287, %v279, %v286
        %vm289 = vcmp.eq.f32.partialorder %v279, 0.0
        %v290 = vand.u32 %v279, 2147483648
        %v291 = vsel %vm289, %v290, %v288
        %v292 = vmul.f32 %v291, %v277
        %vm293 = vcmp.lt.f32.partialorder %v262, 0.0
        %v294 = vsub.f32 3.1415927, %v292
        %v295 = vsel %vm293, %v294, %v292
        %v296 = vmul.f32 %v295, 57.29578
        %p297 = scmp.ne.s32.totalorder %s27, 0
        // Predicated region
        $region37: #{tpu_custom_call.1} parent=27 // pred_check
          %p298 = pneg %p297
        $region38: #{tpu_custom_call.1} parent=27 // pred_check_branch
          %300 = sbr.rel (%p298) target = $region40
        $region39: #{tpu_custom_call.1} parent=27 // pred_region
          %v301 = vadd.f32 %v296, 0.0
          %302 = vst [vmem:[%s225] sm:$0xff] %v301
        $region40: #{tpu_custom_call.1} parent=27 // pred_fallthru
          _
        %p303 = scmp.eq.s32.totalorder %s27, 0
        // Predicated region
        $region41: #{tpu_custom_call.1} parent=27 // pred_check
          %p304 = pneg %p303
        $region42: #{tpu_custom_call.1} parent=27 // pred_check_branch
          %306 = sbr.rel (%p304) target = $region44
        $region43: #{tpu_custom_call.1} parent=27 // pred_region
          %v307 = vlaneseq
          %v308 = vshrl.u32 %v307, 7
          %v309 = vlaneseq
          %v310 = vand.u32 %v309, 127
          %s311 = smul.u32 %s27, 8
          %v312 = vstv %s311
          %v313 = vadd.s32 %v312, %v308
          %v314 = vmul.u32 %v313, 128
          %v315 = vadd.s32 %v314, %v310
          %vm316 = vcmp.lt.s32.totalorder %v315, 256
          %v317 = vsel %vm316, %v296, 0.0
          %v318 = vadd.f32 %v317, 0.0
          %319 = vst [vmem:[%s225] sm:$0xff] %v318
        $region44: #{tpu_custom_call.1} parent=27 // pred_fallthru
          _
        %s320 = sand.u32 %s100, 1
        %s321 = scalar_lea.sflag [#allocation4], %s320
        %s322 = sand.u32 %s100, 1
        %s323 = smul.addr %s322, 8
        %s324 = scalar_lea.vmem [#allocation7], %s323
        // Predicated region
        $region45: #{tpu_custom_call.1} parent=27 // pred_check
          %p325 = pneg %p110
        $region46: #{tpu_custom_call.1} parent=27 // pred_check_branch
          %327 = sbr.rel (%p325) target = $region48
        $region47: #{tpu_custom_call.1} parent=27 // pred_region
          %329 = vsyncadd %s321, 0
          %s330 = sadd.s32 %s27, %s26
          %s331 = smul.addr %s330, 8
          %s332 = scalar_lea.hbm %s2, %s331
          %s334 = sshll.u32 %s324, 4
          %s335 = int_to_ptr.vmem [resolvable:$true] %s334
          %s336 = sshll.u32 %s332, 4
          %s337 = int_to_ptr.hbm [resolvable:$true] %s336
          %339 = dma.vmem_to_hbm [thread:$0]  %s335, 128, %s337, %s321
        $region48: #{tpu_custom_call.1} parent=27 // pred_fallthru
          _
      $region28: #{tpu_custom_call.1} parent=5 // pred_fallthru
        _
      %p340 = scmp.le.s32.totalorder 2, %s17
      // Predicated region
      $region49: #{tpu_custom_call.1} parent=5 // pred_check
        %p341 = pneg %p340
      $region50: #{tpu_custom_call.1} parent=5 // pred_check_branch
        %343 = sbr.rel (%p341) target = $region52
      $region51: #{tpu_custom_call.1} parent=5 // pred_region
        %s344 = ssub.s32 %s17, 2
        // Predicated region
        $region53: #{tpu_custom_call.1} parent=51 // pred_check
          %p345 = pneg %p116
        $region54: #{tpu_custom_call.1} parent=51 // pred_check_branch
          %347 = sbr.rel (%p345) target = $region56
        $region55: #{tpu_custom_call.1} parent=51 // pred_region
          %s348 = sand.u32 %s101, 1
          %s349 = scalar_lea.sflag [#allocation4], %s348
          %s350 = sand.u32 %s101, 1
          %s351 = smul.addr %s350, 8
          %s352 = scalar_lea.vmem [#allocation7], %s351
          %354 = dma.done %s349, 128
        $region56: #{tpu_custom_call.1} parent=51 // pred_fallthru
          _
      $region52: #{tpu_custom_call.1} parent=5 // pred_fallthru
        _
    $region6: #{tpu_custom_call.1} parent=1 // loop_footer
      %s21 = sadd.s32 1, %s17
    $region7: #{tpu_custom_call.1} parent=1 // loop_footer_branch
      %16 = sbr.rel target = $region3
    $region8: #{tpu_custom_call.1} parent=1 // loop_exit
      _
    %355 = vsyncpa [#allocation3], 1
    %s356 = scalar_lea.sflag [#allocation3], 1
    %357 = vsyncpa %s356, 1
    %358 = vsyncpa [#allocation6], 1
    %s359 = scalar_lea.sflag [#allocation6], 1
    %360 = vsyncpa %s359, 1
    %361 = vsyncpa [#allocation4], 1
    %s362 = scalar_lea.sflag [#allocation4], 1
    %363 = vsyncpa %s362, 1

</llo_original>
